<compile_context>
chip_gen: v6e
topology: v6e:2x2x1
jax: 0.10.0
libtpu: 0.0.40
codegen_flags: <defaults>
</compile_context>

<pallas_src>
import math
import functools

import jax
import jax.numpy as jnp
import numpy as np
from jax.experimental import pallas as pl
from jax.experimental.pallas import tpu as pltpu

_LANES = 128
_SUBLANES = 8
_MAX_PACKED_COLS = 1024                    # cap on lcm-based lane packing width
_VMEM_TILE_BUDGET = 24 * 1024 * 1024       # double-buffered in+out bytes / step
_VMEM_LIMIT = 48 * 1024 * 1024             # safe on v7x (64 MiB) and v5e/v6e (128 MiB)


def _round_up(v, m):
    return -(-v // m) * m


# ----------------------------------------------------------------------------
# Kernels
# ----------------------------------------------------------------------------
def _pe2d_kernel_dot(x_ref, d_ref, phase_ref, o_ref):
    """x: (tm, kC) f32; D: (kC, out_cols) f32; phase: (1, out_cols); o: (tm, out_cols).

    arg = x @ D + phase  (MXU, f32-accurate), pe = sin(arg) (single transcendental).
    """
    arg = jnp.dot(x_ref[...], d_ref[...],
                  precision=jax.lax.Precision.HIGHEST,
                  preferred_element_type=jnp.float32)
    o_ref[...] = jnp.sin(arg + phase_ref[...]).astype(o_ref.dtype)


def _pe2d_kernel_mac(x_ref, d_ref, phase_ref, o_ref, *, k, c_pad):
    """VPU fallback: same math as the dot kernel via 2k broadcast MACs."""
    arg = jnp.broadcast_to(phase_ref[...], o_ref.shape).astype(jnp.float32)
    for g in range(k):                      # static unroll
        base = g * c_pad
        arg = (arg
               + x_ref[:, base:base + 1] * d_ref[base:base + 1, :]
               + x_ref[:, base + 1:base + 2] * d_ref[base + 1:base + 2, :])
    o_ref[...] = jnp.sin(arg).astype(o_ref.dtype)


# ----------------------------------------------------------------------------
# Host-side constants / packing choice
# ----------------------------------------------------------------------------
def _lane_constants(d_model):
    """Per-channel constants so pe[:, j] = sin(x0*div0[j] + x1*div1[j] + phase[j])."""
    half = d_model // 2
    j = np.arange(d_model)
    p = j // 2
    div = np.exp(p * (-math.log(10000.0) / max(half, 1)))
    even = (j % 2) == 0
    valid = j < 2 * half
    div0 = np.where(valid & even, div, 0.0).astype(np.float32)
    div1 = np.where(valid & ~even, div, 0.0).astype(np.float32)
    phase = np.where(valid & ~even, np.pi / 2.0, 0.0).astype(np.float32)
    return div0, div1, phase


@functools.lru_cache(maxsize=None)
def _packing(d_model, C):
    """Choose lane packing (k input rows per output row) and build D / phase."""
    if d_model % _LANES == 0:
        k, out_cols = 1, d_model                               # already lane-dense
    else:
        lcm = d_model * _LANES // math.gcd(d_model, _LANES)
        if d_model >= 2 and lcm <= _MAX_PACKED_COLS:
            k, out_cols = lcm // d_model, lcm                  # lane-dense packing
        else:
            k, out_cols = 1, d_model                           # plain (masked vst)
    # Matmul K-dim (= k * c_pad) must be sublane-aligned (multiple of 8).
    c_pad = _round_up(C, _SUBLANES // math.gcd(k, _SUBLANES))

    div0, div1, phase = _lane_constants(d_model)
    D = np.zeros((k * c_pad, out_cols), np.float32)
    for g in range(k):
        D[g * c_pad + 0, g * d_model:(g + 1) * d_model] = div0
        D[g * c_pad + 1, g * d_model:(g + 1) * d_model] = div1
        # rows g*c_pad + 2.. stay zero -> channels >= 2 ignored (folded selection)
    ph = np.tile(phase, k).reshape(1, out_cols)
    return k, c_pad, out_cols, D, ph


# ----------------------------------------------------------------------------
# Wrapper
# ----------------------------------------------------------------------------
def positional_encoding_2d(x, d_model, max_len=1.0, *, block_rows=4096,
                           out_dtype=jnp.float32):
    """JAX/Pallas equivalent of PositionalEncoding2D.forward.

    x: (num, batch, C) with C >= 2.  Returns (num, batch, d_model), `out_dtype`.
    `max_len` is unused in the reference forward (kept for signature parity).
    """
    num, batch, C = x.shape
    assert C >= 2, "PositionalEncoding2D uses channels 0 and 1 of x"
    if d_model < 2:                       # degenerate: reference output is all zeros
        return jnp.zeros((num, batch, d_model), out_dtype)

    M = num * batch
    k, c_pad, out_cols, D_np, ph_np = _packing(int(d_model), int(C))

    x_flat = jnp.asarray(x, jnp.float32).reshape(M, C)     # free row-major view
    m_pad = _round_up(M, k)
    if (m_pad != M) or (c_pad != C):                        # rare, small pad copy
        x_flat = jnp.pad(x_flat, ((0, m_pad - M), (0, c_pad - C)))
    rows0 = m_pad // k
    in_cols = k * c_pad
    x_in = x_flat.reshape(rows0, in_cols)                   # free row-major view

    # ---- row-tile selection --------------------------------------------------
    per_row_bytes = 2 * 4 * (out_cols + in_cols)            # double-buffered f32
    tm_cap = max(_SUBLANES,
                 (_VMEM_TILE_BUDGET // per_row_bytes) // _SUBLANES * _SUBLANES)
    tm = min(max(_SUBLANES, block_rows), tm_cap, _round_up(rows0, _SUBLANES))
    if rows0 >= 4 * _SUBLANES:            # keep >= 2 grid steps for v7x's 2 TCs
        tm = min(tm, _round_up(pl.cdiv(rows0, 2), _SUBLANES))
    tm = max(_SUBLANES, (tm // _SUBLANES) * _SUBLANES)
    grid = (pl.cdiv(rows0, tm),)          # ragged last block: no row padding to tm

    D = jnp.asarray(D_np)
    ph = jnp.asarray(ph_np)

    def run(kernel):
        return pl.pallas_call(
            kernel,
            out_shape=jax.ShapeDtypeStruct((rows0, out_cols), out_dtype),
            grid=grid,
            in_specs=[
                pl.BlockSpec((tm, in_cols), lambda i: (i, 0)),
                pl.BlockSpec(D_np.shape, lambda i: (0, 0)),
                pl.BlockSpec(ph_np.shape, lambda i: (0, 0)),
            ],
            out_specs=pl.BlockSpec((tm, out_cols), lambda i: (i, 0)),
            compiler_params=pltpu.CompilerParams(
                dimension_semantics=("parallel",),
                vmem_limit_bytes=_VMEM_LIMIT,
            ),
        )(x_in, D, ph)

    try:
        out = run(_pe2d_kernel_dot)
    except Exception:
        # Fallback if the small-K MXU matmul fails to lower on some generation.
        out = run(functools.partial(_pe2d_kernel_mac, k=k, c_pad=c_pad))

    pe = out.reshape(m_pad, d_model)      # free row-major unwrap of packed lanes
    if m_pad != M:
        pe = pe[:M]
    return pe.reshape(num, batch, d_model)


# ----------------------------------------------------------------------------
# Pure-JAX reference (mirror of the PyTorch double loop) + self-test
# ----------------------------------------------------------------------------
def _reference(x, d_model):
    num, batch, _ = x.shape
    half = d_model // 2
    pe = jnp.zeros((num, batch, d_model), jnp.float32)
    if half > 0:
        pos = jnp.arange(half, dtype=jnp.float32)
        dt = jnp.exp(pos * (-math.log(10000.0) / half))
        pe = pe.at[:, :, 0:2 * half:2].set(jnp.sin(x[:, :, 0:1].astype(jnp.float32) * dt))
        pe = pe.at[:, :, 1:2 * half:2].set(jnp.cos(x[:, :, 1:2].astype(jnp.float32) * dt))
    return pe


if __name__ == "__main__":
    key = jax.random.PRNGKey(0)
    k1, k2, k3 = jax.random.split(key, 3)

    # Case 1: GMIC-like small shapes (num=8, batch=2, C=4), d_model=32
    #         -> lane-packed MXU path (k=4, out_cols=128), single-block grid.
    x1 = jax.random.normal(k1, (8, 2, 4), dtype=jnp.float32)
    pe1 = jax.block_until_ready(positional_encoding_2d(x1, 32))
    assert pe1.shape == (8, 2, 32) and pe1.dtype == jnp.float32
    assert jnp.allclose(pe1, _reference(x1, 32), atol=1e-5, rtol=1e-5)

    # Case 2: d_model=48 (does not divide 128) and rows not a multiple of k
    #         -> lcm packing (k=8, out_cols=384) + small row pad + ragged block.
    x2 = jax.random.normal(k2, (5, 3, 4), dtype=jnp.float32)
    pe2 = jax.block_until_ready(positional_encoding_2d(x2, 48))
    assert jnp.allclose(pe2, _reference(x2, 48), atol=1e-5, rtol=1e-5)

    # Case 3: larger row count with a small row tile -> multi-step pipelined
    #         grid with a ragged last block (150 packed rows / tm=64 -> 3 steps).
    x3 = jax.random.normal(k3, (25, 24, 4), dtype=jnp.float32)
    pe3 = jax.block_until_ready(positional_encoding_2d(x3, 32, block_rows=64))
    assert jnp.allclose(pe3, _reference(x3, 32), atol=1e-5, rtol=1e-5)

    print("KERNEL_OK")
</pallas_src>

<mosaic_0001>
module attributes {stable_mosaic.version = 11 : i64} {
  func.func @_pe2d_kernel_dot(%arg0: i32, %arg1: memref<8x16xf32, #tpu.memory_space<vmem>>, %arg2: memref<16x128xf32, #tpu.memory_space<vmem>>, %arg3: memref<1x128xf32, #tpu.memory_space<vmem>>, %arg4: memref<8x128xf32, #tpu.memory_space<vmem>>) attributes {dimension_semantics = [#tpu.dimension_semantics<parallel>], iteration_bounds = array<i64: 1>, scalar_prefetch = 0 : i64, scratch_operands = 0 : i64, tpu.core_type = #tpu.core_type<tc>, window_params = [{transform_indices = @transform_0, window_bounds = array<i64: 8, 16>}, {pipeline_mode = #tpu.pipeline_mode<synchronous>, transform_indices = @transform_1, window_bounds = array<i64: 16, 128>}, {pipeline_mode = #tpu.pipeline_mode<synchronous>, transform_indices = @transform_2, window_bounds = array<i64: 1, 128>}, {transform_indices = @transform_3, window_bounds = array<i64: 8, 128>}]} {
    %c0 = arith.constant 0 : index
    %c0_0 = arith.constant 0 : index
    %0 = vector.load %arg1[%c0, %c0_0] : memref<8x16xf32, #tpu.memory_space<vmem>>, vector<8x16xf32>
    %c0_1 = arith.constant 0 : index
    %c0_2 = arith.constant 0 : index
    %1 = vector.load %arg2[%c0_1, %c0_2] : memref<16x128xf32, #tpu.memory_space<vmem>>, vector<16x128xf32>
    %cst = arith.constant dense<0.000000e+00> : vector<8x128xf32>
    %2 = tpu.matmul %0, %1, %cst {dimension_numbers = #tpu.dot_dimension_numbers<[1], [0], [0], [1], [0, 0, 1, 1], [], []>, precision = #tpu.contract_precision<fp32>} : vector<8x16xf32>, vector<16x128xf32>, vector<8x128xf32> -> vector<8x128xf32>
    %c0_3 = arith.constant 0 : index
    %c0_4 = arith.constant 0 : index
    %3 = vector.load %arg3[%c0_3, %c0_4] : memref<1x128xf32, #tpu.memory_space<vmem>>, vector<1x128xf32>
    %4 = vector.broadcast %3 : vector<1x128xf32> to vector<8x128xf32>
    %5 = arith.addf %2, %4 : vector<8x128xf32>
    %6 = math.sin %5 : vector<8x128xf32>
    %c0_5 = arith.constant 0 : index
    %c0_6 = arith.constant 0 : index
    %7 = vector.load %arg4[%c0_5, %c0_6] : memref<8x128xf32, #tpu.memory_space<vmem>>, vector<8x128xf32>
    tpu.vector_store %arg4[%c0_5, %c0_6], %6 {strides = array<i32>} : memref<8x128xf32, #tpu.memory_space<vmem>>, vector<8x128xf32>,
    return
  }
  func.func @transform_0(%arg0: i32) -> (i32, i32) {
    %c0_i32 = arith.constant 0 : i32
    %c0_i32_0 = arith.constant 0 : i32
    return %arg0, %c0_i32 : i32, i32
  }
  func.func @transform_1(%arg0: i32) -> (i32, i32) {
    %c0_i32 = arith.constant 0 : i32
    %c0_i32_0 = arith.constant 0 : i32
    %c0_i32_1 = arith.constant 0 : i32
    return %c0_i32, %c0_i32_0 : i32, i32
  }
  func.func @transform_2(%arg0: i32) -> (i32, i32) {
    %c0_i32 = arith.constant 0 : i32
    %c0_i32_0 = arith.constant 0 : i32
    %c0_i32_1 = arith.constant 0 : i32
    return %c0_i32, %c0_i32_0 : i32, i32
  }
  func.func @transform_3(%arg0: i32) -> (i32, i32) {
    %c0_i32 = arith.constant 0 : i32
    %c0_i32_0 = arith.constant 0 : i32
    return %arg0, %c0_i32 : i32, i32
  }
}

module attributes {stable_mosaic.version = 11 : i64} {
  func.func @_pe2d_kernel_mac(%arg0: i32, %arg1: memref<8x16xf32, #tpu.memory_space<vmem>>, %arg2: memref<16x128xf32, #tpu.memory_space<vmem>>, %arg3: memref<1x128xf32, #tpu.memory_space<vmem>>, %arg4: memref<8x128xf32, #tpu.memory_space<vmem>>) attributes {dimension_semantics = [#tpu.dimension_semantics<parallel>], iteration_bounds = array<i64: 1>, scalar_prefetch = 0 : i64, scratch_operands = 0 : i64, tpu.core_type = #tpu.core_type<tc>, window_params = [{transform_indices = @transform_0, window_bounds = array<i64: 8, 16>}, {pipeline_mode = #tpu.pipeline_mode<synchronous>, transform_indices = @transform_1, window_bounds = array<i64: 16, 128>}, {pipeline_mode = #tpu.pipeline_mode<synchronous>, transform_indices = @transform_2, window_bounds = array<i64: 1, 128>}, {transform_indices = @transform_3, window_bounds = array<i64: 8, 128>}]} {
    %c0 = arith.constant 0 : index
    %c0_0 = arith.constant 0 : index
    %0 = vector.load %arg3[%c0, %c0_0] : memref<1x128xf32, #tpu.memory_space<vmem>>, vector<1x128xf32>
    %1 = vector.shape_cast %0 : vector<1x128xf32> to vector<1x128xf32>
    %2 = vector.broadcast %1 : vector<1x128xf32> to vector<8x128xf32>
    %c0_1 = arith.constant 0 : index
    %c0_2 = arith.constant 0 : index
    %3 = vector.load %arg1[%c0_1, %c0_2] : memref<8x16xf32, #tpu.memory_space<vmem>>, vector<8x1xf32>
    %c0_3 = arith.constant 0 : index
    %c0_4 = arith.constant 0 : index
    %4 = vector.load %arg2[%c0_3, %c0_4] : memref<16x128xf32, #tpu.memory_space<vmem>>, vector<1x128xf32>
    %5 = vector.broadcast %3 : vector<8x1xf32> to vector<8x128xf32>
    %6 = vector.broadcast %4 : vector<1x128xf32> to vector<8x128xf32>
    %7 = arith.mulf %5, %6 : vector<8x128xf32>
    %8 = arith.addf %2, %7 : vector<8x128xf32>
    %c0_5 = arith.constant 0 : index
    %c1 = arith.constant 1 : index
    %9 = vector.load %arg1[%c0_5, %c1] : memref<8x16xf32, #tpu.memory_space<vmem>>, vector<8x1xf32>
    %c1_6 = arith.constant 1 : index
    %c0_7 = arith.constant 0 : index
    %10 = vector.load %arg2[%c1_6, %c0_7] : memref<16x128xf32, #tpu.memory_space<vmem>>, vector<1x128xf32>
    %11 = vector.broadcast %9 : vector<8x1xf32> to vector<8x128xf32>
    %12 = vector.broadcast %10 : vector<1x128xf32> to vector<8x128xf32>
    %13 = arith.mulf %11, %12 : vector<8x128xf32>
    %14 = arith.addf %8, %13 : vector<8x128xf32>
    %c0_8 = arith.constant 0 : index
    %c4 = arith.constant 4 : index
    %15 = vector.load %arg1[%c0_8, %c4] : memref<8x16xf32, #tpu.memory_space<vmem>>, vector<8x1xf32>
    %c4_9 = arith.constant 4 : index
    %c0_10 = arith.constant 0 : index
    %16 = vector.load %arg2[%c4_9, %c0_10] : memref<16x128xf32, #tpu.memory_space<vmem>>, vector<1x128xf32>
    %17 = vector.broadcast %15 : vector<8x1xf32> to vector<8x128xf32>
    %18 = vector.broadcast %16 : vector<1x128xf32> to vector<8x128xf32>
    %19 = arith.mulf %17, %18 : vector<8x128xf32>
    %20 = arith.addf %14, %19 : vector<8x128xf32>
    %c0_11 = arith.constant 0 : index
    %c5 = arith.constant 5 : index
    %21 = vector.load %arg1[%c0_11, %c5] : memref<8x16xf32, #tpu.memory_space<vmem>>, vector<8x1xf32>
    %c5_12 = arith.constant 5 : index
    %c0_13 = arith.constant 0 : index
    %22 = vector.load %arg2[%c5_12, %c0_13] : memref<16x128xf32, #tpu.memory_space<vmem>>, vector<1x128xf32>
    %23 = vector.broadcast %21 : vector<8x1xf32> to vector<8x128xf32>
    %24 = vector.broadcast %22 : vector<1x128xf32> to vector<8x128xf32>
    %25 = arith.mulf %23, %24 : vector<8x128xf32>
    %26 = arith.addf %20, %25 : vector<8x128xf32>
    %c0_14 = arith.constant 0 : index
    %c8 = arith.constant 8 : index
    %27 = vector.load %arg1[%c0_14, %c8] : memref<8x16xf32, #tpu.memory_space<vmem>>, vector<8x1xf32>
    %c8_15 = arith.constant 8 : index
    %c0_16 = arith.constant 0 : index
    %28 = vector.load %arg2[%c8_15, %c0_16] : memref<16x128xf32, #tpu.memory_space<vmem>>, vector<1x128xf32>
    %29 = vector.broadcast %27 : vector<8x1xf32> to vector<8x128xf32>
    %30 = vector.broadcast %28 : vector<1x128xf32> to vector<8x128xf32>
    %31 = arith.mulf %29, %30 : vector<8x128xf32>
    %32 = arith.addf %26, %31 : vector<8x128xf32>
    %c0_17 = arith.constant 0 : index
    %c9 = arith.constant 9 : index
    %33 = vector.load %arg1[%c0_17, %c9] : memref<8x16xf32, #tpu.memory_space<vmem>>, vector<8x1xf32>
    %c9_18 = arith.constant 9 : index
    %c0_19 = arith.constant 0 : index
    %34 = vector.load %arg2[%c9_18, %c0_19] : memref<16x128xf32, #tpu.memory_space<vmem>>, vector<1x128xf32>
    %35 = vector.broadcast %33 : vector<8x1xf32> to vector<8x128xf32>
    %36 = vector.broadcast %34 : vector<1x128xf32> to vector<8x128xf32>
    %37 = arith.mulf %35, %36 : vector<8x128xf32>
    %38 = arith.addf %32, %37 : vector<8x128xf32>
    %c0_20 = arith.constant 0 : index
    %c12 = arith.constant 12 : index
    %39 = vector.load %arg1[%c0_20, %c12] : memref<8x16xf32, #tpu.memory_space<vmem>>, vector<8x1xf32>
    %c12_21 = arith.constant 12 : index
    %c0_22 = arith.constant 0 : index
    %40 = vector.load %arg2[%c12_21, %c0_22] : memref<16x128xf32, #tpu.memory_space<vmem>>, vector<1x128xf32>
    %41 = vector.broadcast %39 : vector<8x1xf32> to vector<8x128xf32>
    %42 = vector.broadcast %40 : vector<1x128xf32> to vector<8x128xf32>
    %43 = arith.mulf %41, %42 : vector<8x128xf32>
    %44 = arith.addf %38, %43 : vector<8x128xf32>
    %c0_23 = arith.constant 0 : index
    %c13 = arith.constant 13 : index
    %45 = vector.load %arg1[%c0_23, %c13] : memref<8x16xf32, #tpu.memory_space<vmem>>, vector<8x1xf32>
    %c13_24 = arith.constant 13 : index
    %c0_25 = arith.constant 0 : index
    %46 = vector.load %arg2[%c13_24, %c0_25] : memref<16x128xf32, #tpu.memory_space<vmem>>, vector<1x128xf32>
    %47 = vector.broadcast %45 : vector<8x1xf32> to vector<8x128xf32>
    %48 = vector.broadcast %46 : vector<1x128xf32> to vector<8x128xf32>
    %49 = arith.mulf %47, %48 : vector<8x128xf32>
    %50 = arith.addf %44, %49 : vector<8x128xf32>
    %51 = math.sin %50 : vector<8x128xf32>
    %c0_26 = arith.constant 0 : index
    %c0_27 = arith.constant 0 : index
    %52 = vector.load %arg4[%c0_26, %c0_27] : memref<8x128xf32, #tpu.memory_space<vmem>>, vector<8x128xf32>
    tpu.vector_store %arg4[%c0_26, %c0_27], %51 {strides = array<i32>} : memref<8x128xf32, #tpu.memory_space<vmem>>, vector<8x128xf32>,
    return
  }
  func.func @transform_0(%arg0: i32) -> (i32, i32) {
    %c0_i32 = arith.constant 0 : i32
    %c0_i32_0 = arith.constant 0 : i32
    return %arg0, %c0_i32 : i32, i32
  }
  func.func @transform_1(%arg0: i32) -> (i32, i32) {
    %c0_i32 = arith.constant 0 : i32
    %c0_i32_0 = arith.constant 0 : i32
    %c0_i32_1 = arith.constant 0 : i32
    return %c0_i32, %c0_i32_0 : i32, i32
  }
  func.func @transform_2(%arg0: i32) -> (i32, i32) {
    %c0_i32 = arith.constant 0 : i32
    %c0_i32_0 = arith.constant 0 : i32
    %c0_i32_1 = arith.constant 0 : i32
    return %c0_i32, %c0_i32_0 : i32, i32
  }
  func.func @transform_3(%arg0: i32) -> (i32, i32) {
    %c0_i32 = arith.constant 0 : i32
    %c0_i32_0 = arith.constant 0 : i32
    return %arg0, %c0_i32 : i32, i32
  }
}

</mosaic_0001>

<llo_original>
// kernel: tpu_custom_call.1
$region0: #{tpu_custom_call.1}
  #allocation0 [shape = 'u32[]', space=smem, size = 0x4, offset = 0x4, fixed_abs, tag = 'smem constant byte address 0x4 - core index']
  #allocation1 [shape = 'u32[144,128]{1,0:T(1,128)}', space=vmem, size = 0x12000, scoped, tag = 'internal scratch']
  %s0 = inlined_call_operand.hbm [shape: f32[4,16], index: 0, kind: input, shape index: {}]
  %s1 = inlined_call_operand.hbm [shape: f32[16,128], index: 1, kind: input, shape index: {}]
  %s2 = inlined_call_operand.vmem [shape: f32[1,128], index: 2, kind: input, shape index: {}]
  %s3 = inlined_call_operand.hbm [shape: f32[4,128], index: 3, kind: output, shape index: {}]
  %s4 = sld [smem:[#allocation0]]
  $region30: #{tpu_custom_call.1} parent=0
    _
  %s6 = ssub.s32 1, %s4
  %s7 = scalar_select 0, %s6, %s4
  $region1: #{tpu_custom_call.1} parent=0
    #allocation2 [shape = 'u8[4096]{0}', space=vmem, size = 0x1000, scoped, tag = 'input window, operand 0, single buffered']
    #allocation3 [shape = 's32[1]{0}', space=sflag, size = 0x4, scoped, tag = 'scoped memory for tpu_custom_call.1']
    #allocation4 [shape = 's32[1]{0}', space=sflag, size = 0x4, scoped, tag = 'scoped memory for tpu_custom_call.1']
    #allocation5 [shape = 'u8[8192]{0}', space=vmem, size = 0x2000, scoped, tag = 'input window, operand 1, single buffered']
    #allocation6 [shape = 's32[1]{0}', space=sflag, size = 0x4, scoped, tag = 'scoped memory for tpu_custom_call.1']
    #allocation7 [shape = 'u8[4096]{0}', space=vmem, size = 0x1000, scoped, tag = 'output window, operand 0, single buffered']
    %8 = vsyncpa [#allocation3], 0
    %9 = vsyncpa [#allocation6], 0
    %10 = vsyncpa [#allocation4], 0
    // Predicated region
    $region2: #{tpu_custom_call.1} parent=1 // pred_check
      _
    $region3: #{tpu_custom_call.1} parent=1 // pred_check_branch
      %12 = sbr.rel (0) target = $region5
    $region4: #{tpu_custom_call.1} parent=1 // pred_region
      %s14 = ssub.s32 128, 64
      %15 = vsyncadd [#allocation3], %s14
      %s16 = sshll.u32 [#allocation2], 4
      %s17 = int_to_ptr.vmem [resolvable:$true] %s16
      %22 = dma.hbm_to_vmem [thread:$0]  %s0, 64, %s17, [#allocation3], 64, 64, 4
    $region5: #{tpu_custom_call.1} parent=1 // pred_fallthru
      _
    // Predicated region
    $region6: #{tpu_custom_call.1} parent=1 // pred_check
      _
    $region7: #{tpu_custom_call.1} parent=1 // pred_check_branch
      %24 = sbr.rel (0) target = $region9
    $region8: #{tpu_custom_call.1} parent=1 // pred_region
      %s26 = ssub.s32 256, 256
      %27 = vsyncadd [#allocation6], %s26
      %s28 = sshll.u32 [#allocation5], 4
      %s29 = int_to_ptr.vmem [resolvable:$true] %s28
      %34 = dma.hbm_to_vmem [thread:$0]  %s1, 256, %s29, [#allocation6], 128, 128, 8
    $region9: #{tpu_custom_call.1} parent=1 // pred_fallthru
      _
    // Predicated region
    $region10: #{tpu_custom_call.1} parent=1 // pred_check
      _
    $region11: #{tpu_custom_call.1} parent=1 // pred_check_branch
      %36 = sbr.rel (0) target = $region13
    $region12: #{tpu_custom_call.1} parent=1 // pred_region
      _
    $region13: #{tpu_custom_call.1} parent=1 // pred_fallthru
      _
    // Predicated region
    $region14: #{tpu_custom_call.1} parent=1 // pred_check
      _
    $region15: #{tpu_custom_call.1} parent=1 // pred_check_branch
      %38 = sbr.rel (0) target = $region17
    $region16: #{tpu_custom_call.1} parent=1 // pred_region
      %39 = dma.done [#allocation3], 128
    $region17: #{tpu_custom_call.1} parent=1 // pred_fallthru
      _
    // Predicated region
    $region18: #{tpu_custom_call.1} parent=1 // pred_check
      _
    $region19: #{tpu_custom_call.1} parent=1 // pred_check_branch
      %41 = sbr.rel (0) target = $region21
    $region20: #{tpu_custom_call.1} parent=1 // pred_region
      %42 = dma.done [#allocation6], 256
    $region21: #{tpu_custom_call.1} parent=1 // pred_fallthru
      _
    %v43 = vld [vmem:[#allocation2] sm:$0xff]
    %v44 = vld [vmem:[#allocation5] sm:$0xff]
    %v45 = vld [vmem:[#allocation5 + $0x8] sm:$0xff]
    %v46 = vld [vmem:[%s2] sm:$0x1]
    %v48 = vlaneseq
    %v49 = vshrl.u32 %v48, 7
    %v50 = vsub.s32 0, %v49
    %v51 = vrot.slane %v46, %v50
    %vm53 = vcmask 130048
    %v55 = vsel %vm53, %v43, 0
    %57 = vmatprep.subr.mxu0 0.0
    %58 = vmatpush1.msra.mxu0 0.0
    %59 = vmatprep.subr.mxu0 0.0
    %60 = vmatpush1.msra.mxu0 0.0
    %61 = vmatprep.subr.mxu0 0.0
    %62 = vmatpush1.msra.mxu0 0.0
    %63 = vmatprep.subr.mxu0 0.0
    %64 = vmatpush1.msra.mxu0 0.0
    %65 = vmatprep.subr.mxu0 0.0
    %66 = vmatpush1.msra.mxu0 0.0
    %67 = vmatprep.subr.mxu0 0.0
    %68 = vmatpush1.msra.mxu0 0.0
    %69 = vmatprep.subr.mxu0 0.0
    %70 = vmatpush1.msra.mxu0 0.0
    %71 = vmatprep.subr.mxu0 0.0
    %72 = vmatpush1.msra.mxu0 0.0
    %73 = vmatprep.subr.mxu0 0.0
    %74 = vmatpush1.msra.mxu0 0.0
    %75 = vmatprep.subr.mxu0 0.0
    %76 = vmatpush1.msra.mxu0 0.0
    %77 = vmatprep.subr.mxu0 0.0
    %78 = vmatpush1.msra.mxu0 0.0
    %79 = vmatprep.subr.mxu0 0.0
    %80 = vmatpush1.msra.mxu0 0.0
    %81 = vmatprep.subr.mxu0 0.0
    %82 = vmatpush1.msra.mxu0 0.0
    %83 = vmatprep.subr.mxu0 0.0
    %84 = vmatpush1.msra.mxu0 0.0
    %85 = vmatprep.subr.mxu0 0.0
    %v86 = vand.u32 %v45, 4294901760
    %87 = vmatpush1.msra.mxu0 %v86
    %88 = vmatprep.subr.mxu0 0.0
    %v89 = vand.u32 %v44, 4294901760
    %90 = vmatpush1.msra.mxu0 %v89
    %91 = vmatprep.subr.mxu0 0.0
    %92 = vmatpush2.msra.mxu0 0.0
    %93 = vmatprep.subr.mxu0 0.0
    %94 = vmatpush2.msra.mxu0 0.0
    %95 = vmatprep.subr.mxu0 0.0
    %96 = vmatpush2.msra.mxu0 0.0
    %97 = vmatprep.subr.mxu0 0.0
    %98 = vmatpush2.msra.mxu0 0.0
    %99 = vmatprep.subr.mxu0 0.0
    %100 = vmatpush2.msra.mxu0 0.0
    %101 = vmatprep.subr.mxu0 0.0
    %102 = vmatpush2.msra.mxu0 0.0
    %103 = vmatprep.subr.mxu0 0.0
    %104 = vmatpush2.msra.mxu0 0.0
    %105 = vmatprep.subr.mxu0 0.0
    %106 = vmatpush2.msra.mxu0 0.0
    %107 = vmatprep.subr.mxu0 0.0
    %108 = vmatpush2.msra.mxu0 0.0
    %109 = vmatprep.subr.mxu0 0.0
    %110 = vmatpush2.msra.mxu0 0.0
    %111 = vmatprep.subr.mxu0 0.0
    %112 = vmatpush2.msra.mxu0 0.0
    %113 = vmatprep.subr.mxu0 0.0
    %114 = vmatpush2.msra.mxu0 0.0
    %115 = vmatprep.subr.mxu0 0.0
    %116 = vmatpush2.msra.mxu0 0.0
    %117 = vmatprep.subr.mxu0 0.0
    %118 = vmatpush2.msra.mxu0 0.0
    %119 = vmatprep.subr.mxu0 0.0
    %120 = vmatpush2.msra.mxu0 0.0
    %121 = vmatprep.subr.mxu0 0.0
    %122 = vmatpush2.msra.mxu0 0.0
    %123 = vmatprep.mubr.f32.mxu0 0.0
    %v124 = vand.u32 %v55, 4294901760
    %v125 = vsub.f32 %v55, %v124
    %v126 = vand.u32 %v125, 4294901760
    %v127 = vsub.f32 %v125, %v126
    %v128 = vand.u32 %v127, 4294901760
    %129 = vmatmul.mubr.f32.gmra.mxu0 %v128
    %v130 = vpop.f32.mrf.mxu0
    %v131 = vadd.f32 %v51, %v130
    %v132 = vpop.f32.mrf.mxu0
    %133 = vdwg.mxu0
    %134 = vmatprep.subr.mxu0 0.0
    %135 = vmatpush1.msra.mxu0 0.0
    %136 = vmatprep.subr.mxu0 0.0
    %137 = vmatpush1.msra.mxu0 0.0
    %138 = vmatprep.subr.mxu0 0.0
    %139 = vmatpush1.msra.mxu0 0.0
    %140 = vmatprep.subr.mxu0 0.0
    %141 = vmatpush1.msra.mxu0 0.0
    %142 = vmatprep.subr.mxu0 0.0
    %143 = vmatpush1.msra.mxu0 0.0
    %144 = vmatprep.subr.mxu0 0.0
    %145 = vmatpush1.msra.mxu0 0.0
    %146 = vmatprep.subr.mxu0 0.0
    %147 = vmatpush1.msra.mxu0 0.0
    %148 = vmatprep.subr.mxu0 0.0
    %149 = vmatpush1.msra.mxu0 0.0
    %150 = vmatprep.subr.mxu0 0.0
    %151 = vmatpush1.msra.mxu0 0.0
    %152 = vmatprep.subr.mxu0 0.0
    %153 = vmatpush1.msra.mxu0 0.0
    %154 = vmatprep.subr.mxu0 0.0
    %155 = vmatpush1.msra.mxu0 0.0
    %156 = vmatprep.subr.mxu0 0.0
    %157 = vmatpush1.msra.mxu0 0.0
    %158 = vmatprep.subr.mxu0 0.0
    %159 = vmatpush1.msra.mxu0 0.0
    %160 = vmatprep.subr.mxu0 0.0
    %161 = vmatpush1.msra.mxu0 0.0
    %162 = vmatprep.subr.mxu0 0.0
    %v163 = vand.u32 %v45, 4294901760
    %v164 = vsub.f32 %v45, %v163
    %v165 = vand.u32 %v164, 4294901760
    %v166 = vsub.f32 %v164, %v165
    %v167 = vand.u32 %v166, 4294901760
    %168 = vmatpush1.msra.mxu0 %v167
    %169 = vmatprep.subr.mxu0 0.0
    %v170 = vand.u32 %v44, 4294901760
    %v171 = vsub.f32 %v44, %v170
    %v172 = vand.u32 %v171, 4294901760
    %v173 = vsub.f32 %v171, %v172
    %v174 = vand.u32 %v173, 4294901760
    %175 = vmatpush1.msra.mxu0 %v174
    %176 = vmatprep.subr.mxu0 0.0
    %177 = vmatpush2.msra.mxu0 0.0
    %178 = vmatprep.subr.mxu0 0.0
    %179 = vmatpush2.msra.mxu0 0.0
    %180 = vmatprep.subr.mxu0 0.0
    %181 = vmatpush2.msra.mxu0 0.0
    %182 = vmatprep.subr.mxu0 0.0
    %183 = vmatpush2.msra.mxu0 0.0
    %184 = vmatprep.subr.mxu0 0.0
    %185 = vmatpush2.msra.mxu0 0.0
    %186 = vmatprep.subr.mxu0 0.0
    %187 = vmatpush2.msra.mxu0 0.0
    %188 = vmatprep.subr.mxu0 0.0
    %189 = vmatpush2.msra.mxu0 0.0
    %190 = vmatprep.subr.mxu0 0.0
    %191 = vmatpush2.msra.mxu0 0.0
    %192 = vmatprep.subr.mxu0 0.0
    %193 = vmatpush2.msra.mxu0 0.0
    %194 = vmatprep.subr.mxu0 0.0
    %195 = vmatpush2.msra.mxu0 0.0
    %196 = vmatprep.subr.mxu0 0.0
    %197 = vmatpush2.msra.mxu0 0.0
    %198 = vmatprep.subr.mxu0 0.0
    %199 = vmatpush2.msra.mxu0 0.0
    %200 = vmatprep.subr.mxu0 0.0
    %201 = vmatpush2.msra.mxu0 0.0
    %202 = vmatprep.subr.mxu0 0.0
    %203 = vmatpush2.msra.mxu0 0.0
    %204 = vmatprep.subr.mxu0 0.0
    %205 = vmatpush2.msra.mxu0 0.0
    %206 = vmatprep.subr.mxu0 0.0
    %207 = vmatpush2.msra.mxu0 0.0
    %208 = vmatprep.mubr.f32.mxu0 0.0
    %v209 = vand.u32 %v55, 4294901760
    %210 = vmatmul.mubr.f32.gmra.mxu0 %v209
    %v211 = vpop.f32.mrf.mxu0
    %v212 = vadd.f32 %v131, %v211
    %v213 = vpop.f32.mrf.mxu0
    %214 = vdwg.mxu0
    %215 = vmatprep.subr.mxu0 0.0
    %216 = vmatpush1.msra.mxu0 0.0
    %217 = vmatprep.subr.mxu0 0.0
    %218 = vmatpush1.msra.mxu0 0.0
    %219 = vmatprep.subr.mxu0 0.0
    %220 = vmatpush1.msra.mxu0 0.0
    %221 = vmatprep.subr.mxu0 0.0
    %222 = vmatpush1.msra.mxu0 0.0
    %223 = vmatprep.subr.mxu0 0.0
    %224 = vmatpush1.msra.mxu0 0.0
    %225 = vmatprep.subr.mxu0 0.0
    %226 = vmatpush1.msra.mxu0 0.0
    %227 = vmatprep.subr.mxu0 0.0
    %228 = vmatpush1.msra.mxu0 0.0
    %229 = vmatprep.subr.mxu0 0.0
    %230 = vmatpush1.msra.mxu0 0.0
    %231 = vmatprep.subr.mxu0 0.0
    %232 = vmatpush1.msra.mxu0 0.0
    %233 = vmatprep.subr.mxu0 0.0
    %234 = vmatpush1.msra.mxu0 0.0
    %235 = vmatprep.subr.mxu0 0.0
    %236 = vmatpush1.msra.mxu0 0.0
    %237 = vmatprep.subr.mxu0 0.0
    %238 = vmatpush1.msra.mxu0 0.0
    %239 = vmatprep.subr.mxu0 0.0
    %240 = vmatpush1.msra.mxu0 0.0
    %241 = vmatprep.subr.mxu0 0.0
    %242 = vmatpush1.msra.mxu0 0.0
    %243 = vmatprep.subr.mxu0 0.0
    %v244 = vand.u32 %v45, 4294901760
    %v245 = vsub.f32 %v45, %v244
    %246 = vmatpush1.msra.mxu0 %v245
    %247 = vmatprep.subr.mxu0 0.0
    %v248 = vand.u32 %v44, 4294901760
    %v249 = vsub.f32 %v44, %v248
    %250 = vmatpush1.msra.mxu0 %v249
    %251 = vmatprep.subr.mxu0 0.0
    %252 = vmatpush2.msra.mxu0 0.0
    %253 = vmatprep.subr.mxu0 0.0
    %254 = vmatpush2.msra.mxu0 0.0
    %255 = vmatprep.subr.mxu0 0.0
    %256 = vmatpush2.msra.mxu0 0.0
    %257 = vmatprep.subr.mxu0 0.0
    %258 = vmatpush2.msra.mxu0 0.0
    %259 = vmatprep.subr.mxu0 0.0
    %260 = vmatpush2.msra.mxu0 0.0
    %261 = vmatprep.subr.mxu0 0.0
    %262 = vmatpush2.msra.mxu0 0.0
    %263 = vmatprep.subr.mxu0 0.0
    %264 = vmatpush2.msra.mxu0 0.0
    %265 = vmatprep.subr.mxu0 0.0
    %266 = vmatpush2.msra.mxu0 0.0
    %267 = vmatprep.subr.mxu0 0.0
    %268 = vmatpush2.msra.mxu0 0.0
    %269 = vmatprep.subr.mxu0 0.0
    %270 = vmatpush2.msra.mxu0 0.0
    %271 = vmatprep.subr.mxu0 0.0
    %272 = vmatpush2.msra.mxu0 0.0
    %273 = vmatprep.subr.mxu0 0.0
    %274 = vmatpush2.msra.mxu0 0.0
    %275 = vmatprep.subr.mxu0 0.0
    %276 = vmatpush2.msra.mxu0 0.0
    %277 = vmatprep.subr.mxu0 0.0
    %278 = vmatpush2.msra.mxu0 0.0
    %279 = vmatprep.subr.mxu0 0.0
    %280 = vmatpush2.msra.mxu0 0.0
    %281 = vmatprep.subr.mxu0 0.0
    %282 = vmatpush2.msra.mxu0 0.0
    %283 = vmatprep.mubr.f32.mxu0 0.0
    %v284 = vand.u32 %v55, 4294901760
    %v285 = vsub.f32 %v55, %v284
    %286 = vmatmul.mubr.f32.gmra.mxu0 %v285
    %v287 = vpop.f32.mrf.mxu0
    %v288 = vadd.f32 %v212, %v287
    %v289 = vpop.f32.mrf.mxu0
    %290 = vdwg.mxu0
    %291 = vmatprep.subr.mxu0 0.0
    %292 = vmatpush1.msra.mxu0 0.0
    %293 = vmatprep.subr.mxu0 0.0
    %294 = vmatpush1.msra.mxu0 0.0
    %295 = vmatprep.subr.mxu0 0.0
    %296 = vmatpush1.msra.mxu0 0.0
    %297 = vmatprep.subr.mxu0 0.0
    %298 = vmatpush1.msra.mxu0 0.0
    %299 = vmatprep.subr.mxu0 0.0
    %300 = vmatpush1.msra.mxu0 0.0
    %301 = vmatprep.subr.mxu0 0.0
    %302 = vmatpush1.msra.mxu0 0.0
    %303 = vmatprep.subr.mxu0 0.0
    %304 = vmatpush1.msra.mxu0 0.0
    %305 = vmatprep.subr.mxu0 0.0
    %306 = vmatpush1.msra.mxu0 0.0
    %307 = vmatprep.subr.mxu0 0.0
    %308 = vmatpush1.msra.mxu0 0.0
    %309 = vmatprep.subr.mxu0 0.0
    %310 = vmatpush1.msra.mxu0 0.0
    %311 = vmatprep.subr.mxu0 0.0
    %312 = vmatpush1.msra.mxu0 0.0
    %313 = vmatprep.subr.mxu0 0.0
    %314 = vmatpush1.msra.mxu0 0.0
    %315 = vmatprep.subr.mxu0 0.0
    %316 = vmatpush1.msra.mxu0 0.0
    %317 = vmatprep.subr.mxu0 0.0
    %318 = vmatpush1.msra.mxu0 0.0
    %319 = vmatprep.subr.mxu0 0.0
    %v320 = vand.u32 %v45, 4294901760
    %321 = vmatpush1.msra.mxu0 %v320
    %322 = vmatprep.subr.mxu0 0.0
    %v323 = vand.u32 %v44, 4294901760
    %324 = vmatpush1.msra.mxu0 %v323
    %325 = vmatprep.subr.mxu0 0.0
    %326 = vmatpush2.msra.mxu0 0.0
    %327 = vmatprep.subr.mxu0 0.0
    %328 = vmatpush2.msra.mxu0 0.0
    %329 = vmatprep.subr.mxu0 0.0
    %330 = vmatpush2.msra.mxu0 0.0
    %331 = vmatprep.subr.mxu0 0.0
    %332 = vmatpush2.msra.mxu0 0.0
    %333 = vmatprep.subr.mxu0 0.0
    %334 = vmatpush2.msra.mxu0 0.0
    %335 = vmatprep.subr.mxu0 0.0
    %336 = vmatpush2.msra.mxu0 0.0
    %337 = vmatprep.subr.mxu0 0.0
    %338 = vmatpush2.msra.mxu0 0.0
    %339 = vmatprep.subr.mxu0 0.0
    %340 = vmatpush2.msra.mxu0 0.0
    %341 = vmatprep.subr.mxu0 0.0
    %342 = vmatpush2.msra.mxu0 0.0
    %343 = vmatprep.subr.mxu0 0.0
    %344 = vmatpush2.msra.mxu0 0.0
    %345 = vmatprep.subr.mxu0 0.0
    %346 = vmatpush2.msra.mxu0 0.0
    %347 = vmatprep.subr.mxu0 0.0
    %348 = vmatpush2.msra.mxu0 0.0
    %349 = vmatprep.subr.mxu0 0.0
    %350 = vmatpush2.msra.mxu0 0.0
    %351 = vmatprep.subr.mxu0 0.0
    %352 = vmatpush2.msra.mxu0 0.0
    %353 = vmatprep.subr.mxu0 0.0
    %354 = vmatpush2.msra.mxu0 0.0
    %355 = vmatprep.subr.mxu0 0.0
    %356 = vmatpush2.msra.mxu0 0.0
    %357 = vmatprep.mubr.f32.mxu0 0.0
    %v358 = vand.u32 %v55, 4294901760
    %v359 = vsub.f32 %v55, %v358
    %v360 = vand.u32 %v359, 4294901760
    %361 = vmatmul.mubr.f32.gmra.mxu0 %v360
    %v362 = vpop.f32.mrf.mxu0
    %v363 = vadd.f32 %v288, %v362
    %v364 = vpop.f32.mrf.mxu0
    %365 = vdwg.mxu0
    %366 = vmatprep.subr.mxu0 0.0
    %367 = vmatpush1.msra.mxu0 0.0
    %368 = vmatprep.subr.mxu0 0.0
    %369 = vmatpush1.msra.mxu0 0.0
    %370 = vmatprep.subr.mxu0 0.0
    %371 = vmatpush1.msra.mxu0 0.0
    %372 = vmatprep.subr.mxu0 0.0
    %373 = vmatpush1.msra.mxu0 0.0
    %374 = vmatprep.subr.mxu0 0.0
    %375 = vmatpush1.msra.mxu0 0.0
    %376 = vmatprep.subr.mxu0 0.0
    %377 = vmatpush1.msra.mxu0 0.0
    %378 = vmatprep.subr.mxu0 0.0
    %379 = vmatpush1.msra.mxu0 0.0
    %380 = vmatprep.subr.mxu0 0.0
    %381 = vmatpush1.msra.mxu0 0.0
    %382 = vmatprep.subr.mxu0 0.0
    %383 = vmatpush1.msra.mxu0 0.0
    %384 = vmatprep.subr.mxu0 0.0
    %385 = vmatpush1.msra.mxu0 0.0
    %386 = vmatprep.subr.mxu0 0.0
    %387 = vmatpush1.msra.mxu0 0.0
    %388 = vmatprep.subr.mxu0 0.0
    %389 = vmatpush1.msra.mxu0 0.0
    %390 = vmatprep.subr.mxu0 0.0
    %391 = vmatpush1.msra.mxu0 0.0
    %392 = vmatprep.subr.mxu0 0.0
    %393 = vmatpush1.msra.mxu0 0.0
    %394 = vmatprep.subr.mxu0 0.0
    %v395 = vand.u32 %v45, 4294901760
    %v396 = vsub.f32 %v45, %v395
    %v397 = vand.u32 %v396, 4294901760
    %398 = vmatpush1.msra.mxu0 %v397
    %399 = vmatprep.subr.mxu0 0.0
    %v400 = vand.u32 %v44, 4294901760
    %v401 = vsub.f32 %v44, %v400
    %v402 = vand.u32 %v401, 4294901760
    %403 = vmatpush1.msra.mxu0 %v402
    %404 = vmatprep.subr.mxu0 0.0
    %405 = vmatpush2.msra.mxu0 0.0
    %406 = vmatprep.subr.mxu0 0.0
    %407 = vmatpush2.msra.mxu0 0.0
    %408 = vmatprep.subr.mxu0 0.0
    %409 = vmatpush2.msra.mxu0 0.0
    %410 = vmatprep.subr.mxu0 0.0
    %411 = vmatpush2.msra.mxu0 0.0
    %412 = vmatprep.subr.mxu0 0.0
    %413 = vmatpush2.msra.mxu0 0.0
    %414 = vmatprep.subr.mxu0 0.0
    %415 = vmatpush2.msra.mxu0 0.0
    %416 = vmatprep.subr.mxu0 0.0
    %417 = vmatpush2.msra.mxu0 0.0
    %418 = vmatprep.subr.mxu0 0.0
    %419 = vmatpush2.msra.mxu0 0.0
    %420 = vmatprep.subr.mxu0 0.0
    %421 = vmatpush2.msra.mxu0 0.0
    %422 = vmatprep.subr.mxu0 0.0
    %423 = vmatpush2.msra.mxu0 0.0
    %424 = vmatprep.subr.mxu0 0.0
    %425 = vmatpush2.msra.mxu0 0.0
    %426 = vmatprep.subr.mxu0 0.0
    %427 = vmatpush2.msra.mxu0 0.0
    %428 = vmatprep.subr.mxu0 0.0
    %429 = vmatpush2.msra.mxu0 0.0
    %430 = vmatprep.subr.mxu0 0.0
    %431 = vmatpush2.msra.mxu0 0.0
    %432 = vmatprep.subr.mxu0 0.0
    %433 = vmatpush2.msra.mxu0 0.0
    %434 = vmatprep.subr.mxu0 0.0
    %435 = vmatpush2.msra.mxu0 0.0
    %436 = vmatprep.mubr.f32.mxu0 0.0
    %v437 = vand.u32 %v55, 4294901760
    %438 = vmatmul.mubr.f32.gmra.mxu0 %v437
    %v439 = vpop.f32.mrf.mxu0
    %v440 = vadd.f32 %v363, %v439
    %v441 = vpop.f32.mrf.mxu0
    %442 = vdwg.mxu0
    %443 = vmatprep.subr.mxu0 0.0
    %444 = vmatpush1.msra.mxu0 0.0
    %445 = vmatprep.subr.mxu0 0.0
    %446 = vmatpush1.msra.mxu0 0.0
    %447 = vmatprep.subr.mxu0 0.0
    %448 = vmatpush1.msra.mxu0 0.0
    %449 = vmatprep.subr.mxu0 0.0
    %450 = vmatpush1.msra.mxu0 0.0
    %451 = vmatprep.subr.mxu0 0.0
    %452 = vmatpush1.msra.mxu0 0.0
    %453 = vmatprep.subr.mxu0 0.0
    %454 = vmatpush1.msra.mxu0 0.0
    %455 = vmatprep.subr.mxu0 0.0
    %456 = vmatpush1.msra.mxu0 0.0
    %457 = vmatprep.subr.mxu0 0.0
    %458 = vmatpush1.msra.mxu0 0.0
    %459 = vmatprep.subr.mxu0 0.0
    %460 = vmatpush1.msra.mxu0 0.0
    %461 = vmatprep.subr.mxu0 0.0
    %462 = vmatpush1.msra.mxu0 0.0
    %463 = vmatprep.subr.mxu0 0.0
    %464 = vmatpush1.msra.mxu0 0.0
    %465 = vmatprep.subr.mxu0 0.0
    %466 = vmatpush1.msra.mxu0 0.0
    %467 = vmatprep.subr.mxu0 0.0
    %468 = vmatpush1.msra.mxu0 0.0
    %469 = vmatprep.subr.mxu0 0.0
    %470 = vmatpush1.msra.mxu0 0.0
    %471 = vmatprep.subr.mxu0 0.0
    %v472 = vand.u32 %v45, 4294901760
    %473 = vmatpush1.msra.mxu0 %v472
    %474 = vmatprep.subr.mxu0 0.0
    %v475 = vand.u32 %v44, 4294901760
    %476 = vmatpush1.msra.mxu0 %v475
    %477 = vmatprep.subr.mxu0 0.0
    %478 = vmatpush2.msra.mxu0 0.0
    %479 = vmatprep.subr.mxu0 0.0
    %480 = vmatpush2.msra.mxu0 0.0
    %481 = vmatprep.subr.mxu0 0.0
    %482 = vmatpush2.msra.mxu0 0.0
    %483 = vmatprep.subr.mxu0 0.0
    %484 = vmatpush2.msra.mxu0 0.0
    %485 = vmatprep.subr.mxu0 0.0
    %486 = vmatpush2.msra.mxu0 0.0
    %487 = vmatprep.subr.mxu0 0.0
    %488 = vmatpush2.msra.mxu0 0.0
    %489 = vmatprep.subr.mxu0 0.0
    %490 = vmatpush2.msra.mxu0 0.0
    %491 = vmatprep.subr.mxu0 0.0
    %492 = vmatpush2.msra.mxu0 0.0
    %493 = vmatprep.subr.mxu0 0.0
    %494 = vmatpush2.msra.mxu0 0.0
    %495 = vmatprep.subr.mxu0 0.0
    %496 = vmatpush2.msra.mxu0 0.0
    %497 = vmatprep.subr.mxu0 0.0
    %498 = vmatpush2.msra.mxu0 0.0
    %499 = vmatprep.subr.mxu0 0.0
    %500 = vmatpush2.msra.mxu0 0.0
    %501 = vmatprep.subr.mxu0 0.0
    %502 = vmatpush2.msra.mxu0 0.0
    %503 = vmatprep.subr.mxu0 0.0
    %504 = vmatpush2.msra.mxu0 0.0
    %505 = vmatprep.subr.mxu0 0.0
    %506 = vmatpush2.msra.mxu0 0.0
    %507 = vmatprep.subr.mxu0 0.0
    %508 = vmatpush2.msra.mxu0 0.0
    %509 = vmatprep.mubr.f32.mxu0 0.0
    %v510 = vand.u32 %v55, 4294901760
    %511 = vmatmul.mubr.f32.gmra.mxu0 %v510
    %v512 = vpop.f32.mrf.mxu0
    %v513 = vadd.f32 %v440, %v512
    %v514 = vpop.f32.mrf.mxu0
    %515 = vdwg.mxu0
    %v516 = vand.u32 2147483647, %v513
    %vm517 = vcmp.le.f32.partialorder %v516, 0.7853982
    %vm518 = vcmp.lt.s32.totalorder %v513, 0
    %v519 = vand.u32 %v513, 2139095040
    %v520 = vshrl.u32 %v519, 23
    %v521 = vsub.s32 %v520, 127
    %v522 = vand.u32 2147483647, %v513
    %v523 = vand.u32 %v522, 8388607
    %v524 = vor.u32 %v523, 8388608
    %v525 = vsub.s32 0, %v524
    %v526 = vadd.s32 %v521, 1
    %vm527 = vcmp.gt.s32.totalorder %v526, 0
    %v528 = vsel %vm527, %v526, 0
    %v529 = vshrl.u32 %v528, 5
    %v530 = vand.u32 %v528, 31
    %v531 = vsub.s32 32, %v530
    %v532 = vshrl.u32 683565275, %v531
    %v533 = vshll.u32 683565275, %v530
    %v534 = vshrl.u32 2475754826, %v531
    %v535 = vor.u32 %v533, %v534
    %v536 = vshll.u32 2475754826, %v530
    %v537 = vshrl.u32 2131351028, %v531
    %v538 = vor.u32 %v536, %v537
    %v539 = vshll.u32 2131351028, %v530
    %v540 = vshrl.u32 2102212464, %v531
    %v541 = vor.u32 %v539, %v540
    %v542 = vshll.u32 2102212464, %v530
    %v543 = vshrl.u32 920167782, %v531
    %v544 = vor.u32 %v542, %v543
    %v545 = vshll.u32 920167782, %v530
    %v546 = vshrl.u32 1326507024, %v531
    %v547 = vor.u32 %v545, %v546
    %vm548 = vcmp.lt.s32.totalorder %v529, 1
    %vm549 = vcmp.lt.s32.totalorder %v529, 2
    %vm550 = vcmp.lt.s32.totalorder %v529, 3
    %vm551 = vcmp.lt.s32.totalorder %v529, 4
    %v552 = vsel %vm548, %v532, %v535
    %v553 = vsel %vm551, %v541, 2102212464
    %v554 = vsel %vm550, %v538, %v553
    %v555 = vsel %vm549, %v552, %v554
    %v556 = vsel %vm548, %v535, %v538
    %v557 = vsel %vm551, %v544, 920167782
    %v558 = vsel %vm550, %v541, %v557
    %v559 = vsel %vm549, %v556, %v558
    %v560 = vsel %vm548, %v538, %v541
    %v561 = vsel %vm551, %v547, 1326507024
    %v562 = vsel %vm550, %v544, %v561
    %v563 = vsel %vm549, %v560, %v562
    %v564 = vshll.u32 %v524, 8
    %v565 = vmul.u32.u64.compose %v564, %v563
    %v566 = vextract.low.u32 %v565
    %v567 = vextract.high.u32 %v565
    %v568 = vmul.u32.u64.compose %v564, %v559
    %v569 = vextract.low.u32 %v568
    %v570 = vextract.high.u32 %v568
    %v571 = vmul.u32 %v564, %v555
    %v572 = vadd.s32 %v567, %v569
    %vm573 = vc.u32 %v567, %v569
    %v574 = vadd.s32 %v570, 1
    %v575 = vsel %vm573, %v574, %v570
    %v576 = vadd.s32 %v571, %v575
    %v577 = vadd.s32 %v576, 536870912
    %v578 = vshrl.u32 %v577, 30
    %v579 = vshll.u32 %v578, 30
    %v580 = vsub.s32 %v576, %v579
    %vm581 = vcmp.lt.s32.totalorder %v580, 0
    %v582 = vsub.s32 0, %v580
    %v583 = vsel %vm581, %v582, %v580
    %v584 = vclz %v583
    %v585 = vsub.s32 %v584, 2
    %vm586 = vcmp.gt.s32.totalorder 0, %v585
    %v587 = vsel %vm586, 0, %v585
    %v588 = vsub.s32 32, %v587
    %v589 = vshll.u32 %v580, %v587
    %v590 = vshrl.u32 %v572, %v588
    %v591 = vor.u32 %v589, %v590
    %v592 = vsub.s32 4294967266, %v587
    %v593 = vadd.s32 %v592, 127
    %v594 = vshll.u32 %v593, 23
    %v595 = vor.u32 4788187, %v594
    %v596 = vand.u32 2147483647, %v595
    %v598 = vcvt.s32.f32 %v591
    %v599 = vmul.f32 %v598, %v596
    %v600 = vxor.u32 %v599, 2147483648
    %v601 = vsel %vm518, %v600, %v599
    %v602 = vsub.s32 4, %v578
    %v603 = vsel %vm518, %v602, %v578
    %v604 = vsel %vm517, %v513, %v601
    %v605 = vsel %vm517, 0, %v603
    %v606 = vcosq.f32.pop %v604
    %v607 = vsinq.f32.pop %v604
    %vm608 = vweird.f32 %v513
    %v609 = vadd.s32 %v605, 3
    %v610 = vand.u32 %v609, 3
    %vm611 = vcmp.lt.s32.totalorder %v610, 2
    %vm612 = vcmp.eq.s32.totalorder %v610, 0
    %v613 = vxor.u32 %v607, 2147483648
    %v614 = vsel %vm612, %v606, %v613
    %vm615 = vcmp.eq.s32.totalorder %v610, 2
    %v616 = vxor.u32 %v606, 2147483648
    %v617 = vsel %vm615, %v616, %v607
    %v618 = vsel %vm611, %v614, %v617
    %v619 = vsel %vm608, nan, %v618
    %620 = vst [vmem:[#allocation7] sm:$0xff] %v619
    // Predicated region
    $region22: #{tpu_custom_call.1} parent=1 // pred_check
      _
    $region23: #{tpu_custom_call.1} parent=1 // pred_check_branch
      %622 = sbr.rel (0) target = $region25
    $region24: #{tpu_custom_call.1} parent=1 // pred_region
      %s624 = ssub.s32 128, 64
      %625 = vsyncadd [#allocation4], %s624
      %s626 = sshll.u32 [#allocation7], 4
      %s627 = int_to_ptr.vmem [resolvable:$true] %s626
      %632 = dma.vmem_to_hbm [thread:$0]  %s627, 64, %s3, [#allocation4], 64, 64, 4
    $region25: #{tpu_custom_call.1} parent=1 // pred_fallthru
      _
    // Predicated region
    $region26: #{tpu_custom_call.1} parent=1 // pred_check
      _
    $region27: #{tpu_custom_call.1} parent=1 // pred_check_branch
      %634 = sbr.rel (0) target = $region29
    $region28: #{tpu_custom_call.1} parent=1 // pred_region
      %635 = dma.done [#allocation4], 128
    $region29: #{tpu_custom_call.1} parent=1 // pred_fallthru
      _
    %636 = vsyncpa [#allocation3], 1
    %637 = vsyncpa [#allocation6], 1
    %638 = vsyncpa [#allocation4], 1

// kernel: tpu_custom_call.1
$region0: #{tpu_custom_call.1}
  #allocation0 [shape = 'u32[]', space=smem, size = 0x4, offset = 0x4, fixed_abs, tag = 'smem constant byte address 0x4 - core index']
  #allocation1 [shape = 'u32[144,128]{1,0:T(1,128)}', space=vmem, size = 0x12000, scoped, tag = 'internal scratch']
  %s0 = inlined_call_operand.hbm [shape: f32[4,16], index: 0, kind: input, shape index: {}]
  %s1 = inlined_call_operand.hbm [shape: f32[16,128], index: 1, kind: input, shape index: {}]
  %s2 = inlined_call_operand.vmem [shape: f32[1,128], index: 2, kind: input, shape index: {}]
  %s3 = inlined_call_operand.hbm [shape: f32[4,128], index: 3, kind: output, shape index: {}]
  %s4 = sld [smem:[#allocation0]]
  $region30: #{tpu_custom_call.1} parent=0
    _
  %s6 = ssub.s32 1, %s4
  %s7 = scalar_select 0, %s6, %s4
  $region1: #{tpu_custom_call.1} parent=0
    #allocation2 [shape = 'u8[4096]{0}', space=vmem, size = 0x1000, scoped, tag = 'input window, operand 0, single buffered']
    #allocation3 [shape = 's32[1]{0}', space=sflag, size = 0x4, scoped, tag = 'scoped memory for tpu_custom_call.1']
    #allocation4 [shape = 's32[1]{0}', space=sflag, size = 0x4, scoped, tag = 'scoped memory for tpu_custom_call.1']
    #allocation5 [shape = 'u8[8192]{0}', space=vmem, size = 0x2000, scoped, tag = 'input window, operand 1, single buffered']
    #allocation6 [shape = 's32[1]{0}', space=sflag, size = 0x4, scoped, tag = 'scoped memory for tpu_custom_call.1']
    #allocation7 [shape = 'u8[4096]{0}', space=vmem, size = 0x1000, scoped, tag = 'output window, operand 0, single buffered']
    %8 = vsyncpa [#allocation3], 0
    %9 = vsyncpa [#allocation6], 0
    %10 = vsyncpa [#allocation4], 0
    // Predicated region
    $region2: #{tpu_custom_call.1} parent=1 // pred_check
      _
    $region3: #{tpu_custom_call.1} parent=1 // pred_check_branch
      %12 = sbr.rel (0) target = $region5
    $region4: #{tpu_custom_call.1} parent=1 // pred_region
      %s14 = ssub.s32 128, 64
      %15 = vsyncadd [#allocation3], %s14
      %s16 = sshll.u32 [#allocation2], 4
      %s17 = int_to_ptr.vmem [resolvable:$true] %s16
      %22 = dma.hbm_to_vmem [thread:$0]  %s0, 64, %s17, [#allocation3], 64, 64, 4
    $region5: #{tpu_custom_call.1} parent=1 // pred_fallthru
      _
    // Predicated region
    $region6: #{tpu_custom_call.1} parent=1 // pred_check
      _
    $region7: #{tpu_custom_call.1} parent=1 // pred_check_branch
      %24 = sbr.rel (0) target = $region9
    $region8: #{tpu_custom_call.1} parent=1 // pred_region
      %s26 = ssub.s32 256, 256
      %27 = vsyncadd [#allocation6], %s26
      %s28 = sshll.u32 [#allocation5], 4
      %s29 = int_to_ptr.vmem [resolvable:$true] %s28
      %34 = dma.hbm_to_vmem [thread:$0]  %s1, 256, %s29, [#allocation6], 128, 128, 8
    $region9: #{tpu_custom_call.1} parent=1 // pred_fallthru
      _
    // Predicated region
    $region10: #{tpu_custom_call.1} parent=1 // pred_check
      _
    $region11: #{tpu_custom_call.1} parent=1 // pred_check_branch
      %36 = sbr.rel (0) target = $region13
    $region12: #{tpu_custom_call.1} parent=1 // pred_region
      _
    $region13: #{tpu_custom_call.1} parent=1 // pred_fallthru
      _
    // Predicated region
    $region14: #{tpu_custom_call.1} parent=1 // pred_check
      _
    $region15: #{tpu_custom_call.1} parent=1 // pred_check_branch
      %38 = sbr.rel (0) target = $region17
    $region16: #{tpu_custom_call.1} parent=1 // pred_region
      %39 = dma.done [#allocation3], 128
    $region17: #{tpu_custom_call.1} parent=1 // pred_fallthru
      _
    // Predicated region
    $region18: #{tpu_custom_call.1} parent=1 // pred_check
      _
    $region19: #{tpu_custom_call.1} parent=1 // pred_check_branch
      %41 = sbr.rel (0) target = $region21
    $region20: #{tpu_custom_call.1} parent=1 // pred_region
      %42 = dma.done [#allocation6], 256
    $region21: #{tpu_custom_call.1} parent=1 // pred_fallthru
      _
    %v43 = vld [vmem:[%s2] sm:$0x1]
    %v45 = vlaneseq
    %v46 = vshrl.u32 %v45, 7
    %v47 = vsub.s32 0, %v46
    %v48 = vrot.slane %v43, %v47
    %v50 = vld [vmem:[#allocation2] sm:$0xff]
    %v51 = vld [vmem:[#allocation5] sm:$0x1]
    %53 = vset.pattern.permute.xlu0 0
    %54 = vperm.xlu0 %53, %v50
    %v55 = vpop.permute.xlu0 %54
    %v57 = vlaneseq
    %v58 = vshrl.u32 %v57, 7
    %v59 = vsub.s32 0, %v58
    %v60 = vrot.slane %v51, %v59
    %v61 = vmul.f32 %v55, %v60
    %v62 = vadd.f32 %v48, %v61
    %v63 = vld [vmem:[#allocation5 + $0x1] sm:$0x1]
    %64 = vset.pattern.permute.xlu0 1
    %65 = vperm.xlu0 %64, %v50
    %v66 = vpop.permute.xlu0 %65
    %v68 = vlaneseq
    %v69 = vshrl.u32 %v68, 7
    %v70 = vsub.s32 0, %v69
    %v71 = vrot.slane %v63, %v70
    %v72 = vmul.f32 %v66, %v71
    %v73 = vadd.f32 %v62, %v72
    %v74 = vld [vmem:[#allocation5 + $0x4] sm:$0x1]
    %75 = vset.pattern.permute.xlu0 4
    %76 = vperm.xlu0 %75, %v50
    %v77 = vpop.permute.xlu0 %76
    %v79 = vlaneseq
    %v80 = vshrl.u32 %v79, 7
    %v81 = vsub.s32 0, %v80
    %v82 = vrot.slane %v74, %v81
    %v83 = vmul.f32 %v77, %v82
    %v84 = vadd.f32 %v73, %v83
    %v85 = vld [vmem:[#allocation5 + $0x5] sm:$0x1]
    %86 = vset.pattern.permute.xlu0 5
    %87 = vperm.xlu0 %86, %v50
    %v88 = vpop.permute.xlu0 %87
    %v90 = vlaneseq
    %v91 = vshrl.u32 %v90, 7
    %v92 = vsub.s32 0, %v91
    %v93 = vrot.slane %v85, %v92
    %v94 = vmul.f32 %v88, %v93
    %v95 = vadd.f32 %v84, %v94
    %v96 = vld [vmem:[#allocation5 + $0x8] sm:$0x1]
    %97 = vset.pattern.permute.xlu0 8
    %98 = vperm.xlu0 %97, %v50
    %v99 = vpop.permute.xlu0 %98
    %v101 = vlaneseq
    %v102 = vshrl.u32 %v101, 7
    %v103 = vsub.s32 0, %v102
    %v104 = vrot.slane %v96, %v103
    %v105 = vmul.f32 %v99, %v104
    %v106 = vadd.f32 %v95, %v105
    %v107 = vld [vmem:[#allocation5 + $0x9] sm:$0x1]
    %108 = vset.pattern.permute.xlu0 9
    %109 = vperm.xlu0 %108, %v50
    %v110 = vpop.permute.xlu0 %109
    %v112 = vlaneseq
    %v113 = vshrl.u32 %v112, 7
    %v114 = vsub.s32 0, %v113
    %v115 = vrot.slane %v107, %v114
    %v116 = vmul.f32 %v110, %v115
    %v117 = vadd.f32 %v106, %v116
    %v118 = vld [vmem:[#allocation5 + $0xc] sm:$0x1]
    %119 = vset.pattern.permute.xlu0 12
    %120 = vperm.xlu0 %119, %v50
    %v121 = vpop.permute.xlu0 %120
    %v123 = vlaneseq
    %v124 = vshrl.u32 %v123, 7
    %v125 = vsub.s32 0, %v124
    %v126 = vrot.slane %v118, %v125
    %v127 = vmul.f32 %v121, %v126
    %v128 = vadd.f32 %v117, %v127
    %v129 = vld [vmem:[#allocation5 + $0xd] sm:$0x1]
    %130 = vset.pattern.permute.xlu0 13
    %131 = vperm.xlu0 %130, %v50
    %v132 = vpop.permute.xlu0 %131
    %v134 = vlaneseq
    %v135 = vshrl.u32 %v134, 7
    %v136 = vsub.s32 0, %v135
    %v137 = vrot.slane %v129, %v136
    %v138 = vmul.f32 %v132, %v137
    %v139 = vadd.f32 %v128, %v138
    %v140 = vand.u32 2147483647, %v139
    %vm141 = vcmp.le.f32.partialorder %v140, 0.7853982
    %vm142 = vcmp.lt.s32.totalorder %v139, 0
    %v143 = vand.u32 %v139, 2139095040
    %v144 = vshrl.u32 %v143, 23
    %v145 = vsub.s32 %v144, 127
    %v146 = vand.u32 2147483647, %v139
    %v147 = vand.u32 %v146, 8388607
    %v148 = vor.u32 %v147, 8388608
    %v149 = vsub.s32 0, %v148
    %v150 = vadd.s32 %v145, 1
    %vm151 = vcmp.gt.s32.totalorder %v150, 0
    %v152 = vsel %vm151, %v150, 0
    %v153 = vshrl.u32 %v152, 5
    %v154 = vand.u32 %v152, 31
    %v155 = vsub.s32 32, %v154
    %v156 = vshrl.u32 683565275, %v155
    %v157 = vshll.u32 683565275, %v154
    %v158 = vshrl.u32 2475754826, %v155
    %v159 = vor.u32 %v157, %v158
    %v160 = vshll.u32 2475754826, %v154
    %v161 = vshrl.u32 2131351028, %v155
    %v162 = vor.u32 %v160, %v161
    %v163 = vshll.u32 2131351028, %v154
    %v164 = vshrl.u32 2102212464, %v155
    %v165 = vor.u32 %v163, %v164
    %v166 = vshll.u32 2102212464, %v154
    %v167 = vshrl.u32 920167782, %v155
    %v168 = vor.u32 %v166, %v167
    %v169 = vshll.u32 920167782, %v154
    %v170 = vshrl.u32 1326507024, %v155
    %v171 = vor.u32 %v169, %v170
    %vm172 = vcmp.lt.s32.totalorder %v153, 1
    %vm173 = vcmp.lt.s32.totalorder %v153, 2
    %vm174 = vcmp.lt.s32.totalorder %v153, 3
    %vm175 = vcmp.lt.s32.totalorder %v153, 4
    %v176 = vsel %vm172, %v156, %v159
    %v177 = vsel %vm175, %v165, 2102212464
    %v178 = vsel %vm174, %v162, %v177
    %v179 = vsel %vm173, %v176, %v178
    %v180 = vsel %vm172, %v159, %v162
    %v181 = vsel %vm175, %v168, 920167782
    %v182 = vsel %vm174, %v165, %v181
    %v183 = vsel %vm173, %v180, %v182
    %v184 = vsel %vm172, %v162, %v165
    %v185 = vsel %vm175, %v171, 1326507024
    %v186 = vsel %vm174, %v168, %v185
    %v187 = vsel %vm173, %v184, %v186
    %v188 = vshll.u32 %v148, 8
    %v189 = vmul.u32.u64.compose %v188, %v187
    %v190 = vextract.low.u32 %v189
    %v191 = vextract.high.u32 %v189
    %v192 = vmul.u32.u64.compose %v188, %v183
    %v193 = vextract.low.u32 %v192
    %v194 = vextract.high.u32 %v192
    %v195 = vmul.u32 %v188, %v179
    %v196 = vadd.s32 %v191, %v193
    %vm197 = vc.u32 %v191, %v193
    %v198 = vadd.s32 %v194, 1
    %v199 = vsel %vm197, %v198, %v194
    %v200 = vadd.s32 %v195, %v199
    %v201 = vadd.s32 %v200, 536870912
    %v202 = vshrl.u32 %v201, 30
    %v203 = vshll.u32 %v202, 30
    %v204 = vsub.s32 %v200, %v203
    %vm205 = vcmp.lt.s32.totalorder %v204, 0
    %v206 = vsub.s32 0, %v204
    %v207 = vsel %vm205, %v206, %v204
    %v208 = vclz %v207
    %v209 = vsub.s32 %v208, 2
    %vm210 = vcmp.gt.s32.totalorder 0, %v209
    %v211 = vsel %vm210, 0, %v209
    %v212 = vsub.s32 32, %v211
    %v213 = vshll.u32 %v204, %v211
    %v214 = vshrl.u32 %v196, %v212
    %v215 = vor.u32 %v213, %v214
    %v216 = vsub.s32 4294967266, %v211
    %v217 = vadd.s32 %v216, 127
    %v218 = vshll.u32 %v217, 23
    %v219 = vor.u32 4788187, %v218
    %v220 = vand.u32 2147483647, %v219
    %v222 = vcvt.s32.f32 %v215
    %v223 = vmul.f32 %v222, %v220
    %v224 = vxor.u32 %v223, 2147483648
    %v225 = vsel %vm142, %v224, %v223
    %v226 = vsub.s32 4, %v202
    %v227 = vsel %vm142, %v226, %v202
    %v228 = vsel %vm141, %v139, %v225
    %v229 = vsel %vm141, 0, %v227
    %v230 = vcosq.f32.pop %v228
    %v231 = vsinq.f32.pop %v228
    %vm232 = vweird.f32 %v139
    %v233 = vadd.s32 %v229, 3
    %v234 = vand.u32 %v233, 3
    %vm235 = vcmp.lt.s32.totalorder %v234, 2
    %vm236 = vcmp.eq.s32.totalorder %v234, 0
    %v237 = vxor.u32 %v231, 2147483648
    %v238 = vsel %vm236, %v230, %v237
    %vm239 = vcmp.eq.s32.totalorder %v234, 2
    %v240 = vxor.u32 %v230, 2147483648
    %v241 = vsel %vm239, %v240, %v231
    %v242 = vsel %vm235, %v238, %v241
    %v243 = vsel %vm232, nan, %v242
    %244 = vst [vmem:[#allocation7] sm:$0xff] %v243
    // Predicated region
    $region22: #{tpu_custom_call.1} parent=1 // pred_check
      _
    $region23: #{tpu_custom_call.1} parent=1 // pred_check_branch
      %246 = sbr.rel (0) target = $region25
    $region24: #{tpu_custom_call.1} parent=1 // pred_region
      %s248 = ssub.s32 128, 64
      %249 = vsyncadd [#allocation4], %s248
      %s250 = sshll.u32 [#allocation7], 4
      %s251 = int_to_ptr.vmem [resolvable:$true] %s250
      %256 = dma.vmem_to_hbm [thread:$0]  %s251, 64, %s3, [#allocation4], 64, 64, 4
    $region25: #{tpu_custom_call.1} parent=1 // pred_fallthru
      _
    // Predicated region
    $region26: #{tpu_custom_call.1} parent=1 // pred_check
      _
    $region27: #{tpu_custom_call.1} parent=1 // pred_check_branch
      %258 = sbr.rel (0) target = $region29
    $region28: #{tpu_custom_call.1} parent=1 // pred_region
      %259 = dma.done [#allocation4], 128
    $region29: #{tpu_custom_call.1} parent=1 // pred_fallthru
      _
    %260 = vsyncpa [#allocation3], 1
    %261 = vsyncpa [#allocation6], 1
    %262 = vsyncpa [#allocation4], 1

</llo_original>
